<compile_context>
chip_gen: v7x
topology: tpu7x:2x2x1
jax: 0.10.0
libtpu: 0.0.40
codegen_flags: <defaults>
</compile_context>

<pallas_src>
import functools
import math

import jax
import jax.numpy as jnp
from jax.experimental import pallas as pl
from jax.experimental.pallas import tpu as pltpu

# ----------------------------- config (small, deterministic) -----------------------------
B = 2                  # batch
C_IN = 4               # n_vars
CONTEXT_WINDOW = 32
TARGET_WINDOW = 16
PATCH_LEN = 8
STRIDE = 4
N_LAYERS = 2
DW_KS = (9, 11)        # per-layer large depthwise kernel sizes
SMALL_KS = 3           # re_param_kernel
D_MODEL = 32
BN_EPS = 1e-5

PATCH_NUM = (CONTEXT_WINDOW - PATCH_LEN) // STRIDE + 1     # 7  (padding_patch=None)
HEAD_NF = D_MODEL * PATCH_NUM                              # 224
WIDTH = PATCH_NUM * D_MODEL                                # 224 lane axis of fused layout
OUT_PAD = 128                                              # lane-dense padded output width
MAX_ROW_BLOCK = 128                                        # rows per grid step when batched


def _round_up(x, m):
    return ((x + m - 1) // m) * m


# ----------------------------- in-kernel GELU (tanh approximation) -----------------------------
def _gelu_tanh(x):
    # tanh-form GELU: one EUP tanh + a handful of VALU ops (|err| vs exact erf GELU < ~1e-3).
    c = 0.7978845608028654  # sqrt(2/pi)
    return 0.5 * x * (1.0 + jnp.tanh(c * (x + 0.044715 * x * x * x)))


# ----------------------------- fused forward kernel -----------------------------
def _fused_kernel(*refs, n_layers):
    """Whole ConvTimeNet_backbone forward for one row-block, resident in VMEM/vregs.

    ref order: z(rows,T) f32, wp_w(T,WIDTH) bf16, wp_b(1,WIDTH) f32,
               [wband_i(WIDTH,WIDTH) bf16, vrows_i f32] per layer,
               head_w(WIDTH,OUT_PAD) bf16, head_b(1,OUT_PAD) f32, out(rows,OUT_PAD) f32.
    Working-tensor layout: x[n, p*d_model + d]  (rows on sublanes, 224 dense lanes).
    vrows_i rows: non-final layer -> [conv_bias, bn_scale, a*bn_scale, bn_shift]
                  final layer     -> [conv_bias, a]   (BN affine folded into head_w/head_b)
    """
    z_ref, wpw_ref, wpb_ref = refs[0], refs[1], refs[2]
    layer_refs = refs[3:3 + 2 * n_layers]
    hw_ref, hb_ref, o_ref = refs[3 + 2 * n_layers:]

    # --- W_P linear.  The patch unfold is folded into the (T, patch*d_model) weight at init,
    #     so one bf16 MXU matmul lands directly in the fused (rows, WIDTH) layout.
    x = jnp.dot(z_ref[...].astype(jnp.bfloat16), wpw_ref[...],
                preferred_element_type=jnp.float32) + wpb_ref[...]

    # --- ConvEncoder: stacked ConvEncoderLayers (eval mode, merged re-param DW kernel), unrolled.
    for li in range(n_layers):
        wband = layer_refs[2 * li]          # block-banded DW-conv matrix (WIDTH, WIDTH), bf16
        vrows = layer_refs[2 * li + 1]      # per-lane affine rows, f32

        conv = jnp.dot(x.astype(jnp.bfloat16), wband[...],
                       preferred_element_type=jnp.float32) + vrows[0:1, :]
        act = _gelu_tanh(conv)

        if li < n_layers - 1:
            # SublayerConnection (x + a*act, dropout=0) fused with eval BatchNorm1d affine.
            x = x * vrows[1:2, :] + act * vrows[2:3, :] + vrows[3:4, :]
        else:
            # Last layer: BN scale/shift are folded into head_w/head_b -> only the residual here.
            x = x + act * vrows[1:2, :]

    # --- Flatten_Head: single bf16 matmul; output padded to 128 lanes for an unmasked store.
    o_ref[...] = jnp.dot(x.astype(jnp.bfloat16), hw_ref[...],
                         preferred_element_type=jnp.float32) + hb_ref[...]


def convtimenet_forward(z, params):
    """z: (B, C_in, context_window) float32 -> (B, C_in, target_window) float32."""
    Bn, Cin, T = z.shape
    n = Bn * Cin
    z2d = z.reshape(n, T)  # free metadata reshape (row-major contiguous)

    # Row-axis tiling: blocks of up to 128 rows; pad rows so the grid divides evenly.
    row_block = min(MAX_ROW_BLOCK, _round_up(n, 8))
    n_pad = _round_up(n, row_block)
    if n_pad != n:
        z2d = jnp.pad(z2d, ((0, n_pad - n), (0, 0)))

    args = [z2d, params["wp_w"], params["wp_b"]]
    for lp in params["layers"]:
        args.append(lp["wband"])
        args.append(lp["vrows"])
    args.append(params["head_w"])
    args.append(params["head_b"])

    in_specs = [pl.BlockSpec((row_block, T), lambda i: (i, 0))]
    in_specs += [pl.BlockSpec(a.shape, lambda i: (0, 0)) for a in args[1:]]

    kern = functools.partial(_fused_kernel, n_layers=len(params["layers"]))
    y = pl.pallas_call(
        kern,
        out_shape=jax.ShapeDtypeStruct((n_pad, OUT_PAD), jnp.float32),
        grid=(n_pad // row_block,),
        in_specs=in_specs,
        out_specs=pl.BlockSpec((row_block, OUT_PAD), lambda i: (i, 0)),
        compiler_params=pltpu.CompilerParams(dimension_semantics=("parallel",)),
    )(*args)
    return y[:n, :TARGET_WINDOW].reshape(Bn, Cin, TARGET_WINDOW)


# ----------------------------- parameter init (deterministic) -----------------------------
def init_params(key):
    keys = jax.random.split(key, 32)
    it = iter(keys)

    def nrm(shape, scale):
        return scale * jax.random.normal(next(it), shape, jnp.float32)

    # ---- "torch layout" parameters (also used by the pure-JAX reference) ----
    raw = {
        "wp_w": nrm((D_MODEL, PATCH_LEN), 0.1),   # nn.Linear(patch_len, d_model).weight
        "wp_b": nrm((D_MODEL,), 0.1),
        "layers": [],
    }
    for li in range(N_LAYERS):
        K = DW_KS[li]
        large_w = nrm((D_MODEL, K), 0.1)
        large_b = nrm((D_MODEL,), 0.1)
        small_w = nrm((D_MODEL, SMALL_KS), 0.1)
        small_b = nrm((D_MODEL,), 0.1)
        lpd = (K - SMALL_KS) // 2
        rpd = K - SMALL_KS - lpd
        w_merged = large_w + jnp.pad(small_w, ((0, 0), (lpd, rpd)))  # _get_merged_param()
        b_merged = large_b + small_b
        gamma = 0.5 + jax.random.uniform(next(it), (D_MODEL,), jnp.float32)
        beta = nrm((D_MODEL,), 0.1)
        run_mean = nrm((D_MODEL,), 0.1)
        run_var = 0.5 + jax.random.uniform(next(it), (D_MODEL,), jnp.float32)
        # torch init of SublayerConnection.a is 1e-8; we use a non-degenerate parameter value so
        # the depthwise-conv branch is numerically exercised (forward semantics are identical).
        a_res = jnp.float32(0.5)
        raw["layers"].append(dict(w=w_merged, b=b_merged, gamma=gamma, beta=beta,
                                  mean=run_mean, var=run_var, a=a_res))
    raw["head_w"] = nrm((TARGET_WINDOW, HEAD_NF), 0.05)
    raw["head_b"] = nrm((TARGET_WINDOW,), 0.05)

    # ---- pre-arrange everything once into the fused kernel layout (p*d_model + d lanes) ----
    # W_P weight with the unfold folded in: (CONTEXT_WINDOW, WIDTH)
    wpT = raw["wp_w"].T                                      # (patch_len, d_model)
    wp_big = jnp.zeros((CONTEXT_WINDOW, WIDTH), jnp.float32)
    for p in range(PATCH_NUM):
        wp_big = wp_big.at[p * STRIDE:p * STRIDE + PATCH_LEN,
                           p * D_MODEL:(p + 1) * D_MODEL].set(wpT)

    kp = {
        "wp_w": wp_big.astype(jnp.bfloat16),
        "wp_b": jnp.tile(raw["wp_b"], PATCH_NUM).reshape(1, WIDTH),
        "layers": [],
    }

    d_idx = jnp.arange(D_MODEL)
    last_scale_w = None
    last_shift_w = None
    for li, lr in enumerate(raw["layers"]):
        K = DW_KS[li]
        left = (K - 1) // 2
        # block-banded depthwise-conv matrix:
        #   Wband[p_in*D + d, p_out*D + d] = w[d, k]  with  p_in = p_out + k - left  (zero 'same' pad)
        wband = jnp.zeros((WIDTH, WIDTH), jnp.float32)
        for p_out in range(PATCH_NUM):
            for k in range(K):
                p_in = p_out + k - left
                if 0 <= p_in < PATCH_NUM:
                    wband = wband.at[p_in * D_MODEL + d_idx,
                                     p_out * D_MODEL + d_idx].set(lr["w"][:, k])

        ch_scale = lr["gamma"] / jnp.sqrt(lr["var"] + BN_EPS)
        ch_shift = lr["beta"] - lr["mean"] * ch_scale
        bias_row = jnp.tile(lr["b"], PATCH_NUM)                  # conv bias, tiled over patches

        if li < N_LAYERS - 1:
            vrows = jnp.stack([bias_row,
                               jnp.tile(ch_scale, PATCH_NUM),
                               jnp.tile(lr["a"] * ch_scale, PATCH_NUM),
                               jnp.tile(ch_shift, PATCH_NUM)])   # (4, WIDTH)
        else:
            vrows = jnp.stack([bias_row,
                               jnp.full((WIDTH,), lr["a"], jnp.float32)])  # (2, WIDTH)
            last_scale_w = jnp.tile(ch_scale, PATCH_NUM)
            last_shift_w = jnp.tile(ch_shift, PATCH_NUM)

        kp["layers"].append({"wband": wband.astype(jnp.bfloat16), "vrows": vrows})

    # head weight permuted so y = x @ head_w works in the fused layout, with the last layer's
    # BN affine folded in:  ((x + a*act)*scale + shift) @ Wp + b == (x + a*act) @ (scale*Wp) + (shift@Wp + b)
    hw_perm = jnp.transpose(raw["head_w"].reshape(TARGET_WINDOW, D_MODEL, PATCH_NUM),
                            (2, 1, 0)).reshape(WIDTH, TARGET_WINDOW)
    hw_fold = last_scale_w[:, None] * hw_perm
    hb_fold = raw["head_b"] + last_shift_w @ hw_perm
    head_w = jnp.zeros((WIDTH, OUT_PAD), jnp.float32).at[:, :TARGET_WINDOW].set(hw_fold)
    head_b = jnp.zeros((1, OUT_PAD), jnp.float32).at[0, :TARGET_WINDOW].set(hb_fold)
    kp["head_w"] = head_w.astype(jnp.bfloat16)
    kp["head_b"] = head_b
    return kp, raw


# ----------------------------- pure-JAX reference (mirrors the PyTorch eval forward) ----------
def reference_forward(z, raw):
    Bn, Cin, _ = z.shape
    idx = jnp.arange(PATCH_NUM)[:, None] * STRIDE + jnp.arange(PATCH_LEN)[None, :]
    zU = z[:, :, idx]                                                   # unfold -> (B,C,p,l)
    x = jnp.einsum("bcpl,dl->bcpd", zU, raw["wp_w"]) + raw["wp_b"]      # W_P
    u = x.reshape(Bn * Cin, PATCH_NUM, D_MODEL)
    e = jnp.transpose(u, (0, 2, 1))                                     # (N, d_model, patch_num)
    for li, lr in enumerate(raw["layers"]):
        K = DW_KS[li]
        left = (K - 1) // 2
        ep = jnp.pad(e, ((0, 0), (0, 0), (left, K - 1 - left)))
        conv = sum(ep[:, :, k:k + PATCH_NUM] * lr["w"][None, :, k:k + 1] for k in range(K))
        conv = conv + lr["b"][None, :, None]
        act = jax.nn.gelu(conv, approximate=False)
        s = e + lr["a"] * act
        scale = lr["gamma"] / jnp.sqrt(lr["var"] + BN_EPS)
        shift = lr["beta"] - lr["mean"] * scale
        e = s * scale[None, :, None] + shift[None, :, None]
    flat = e.reshape(Bn * Cin, HEAD_NF)                                 # Flatten(-2): d*patch+p
    y = jnp.einsum("nf,tf->nt", flat, raw["head_w"]) + raw["head_b"]
    return y.reshape(Bn, Cin, TARGET_WINDOW)


# ----------------------------- main -----------------------------
if __name__ == "__main__":
    key = jax.random.PRNGKey(0)
    k_in, k_par = jax.random.split(key)
    z = jax.random.normal(k_in, (B, C_IN, CONTEXT_WINDOW), jnp.float32)
    kparams, raw = init_params(k_par)

    fwd = jax.jit(convtimenet_forward)
    out = fwd(z, kparams)
    jax.block_until_ready(out)

    assert out.shape == (B, C_IN, TARGET_WINDOW), out.shape
    assert out.dtype == jnp.float32

    ref = reference_forward(z, raw)
    err = float(jnp.max(jnp.abs(out - ref)))
    # Tolerance accounts for bf16 MXU operands + tanh-approximate GELU vs the exact-erf f32 reference.
    assert err < 2e-2, f"max abs error vs reference: {err}"
    print("KERNEL_OK")
</pallas_src>

<mosaic_0001>
module attributes {stable_mosaic.version = 11 : i64} {
  func.func @_fused_kernel(%arg0: i32, %arg1: memref<8x32xf32, #tpu.memory_space<vmem>>, %arg2: memref<32x224xbf16, #tpu.memory_space<vmem>>, %arg3: memref<1x224xf32, #tpu.memory_space<vmem>>, %arg4: memref<224x224xbf16, #tpu.memory_space<vmem>>, %arg5: memref<4x224xf32, #tpu.memory_space<vmem>>, %arg6: memref<224x224xbf16, #tpu.memory_space<vmem>>, %arg7: memref<2x224xf32, #tpu.memory_space<vmem>>, %arg8: memref<224x128xbf16, #tpu.memory_space<vmem>>, %arg9: memref<1x128xf32, #tpu.memory_space<vmem>>, %arg10: memref<8x128xf32, #tpu.memory_space<vmem>>) attributes {dimension_semantics = [#tpu.dimension_semantics<parallel>], iteration_bounds = array<i64: 1>, scalar_prefetch = 0 : i64, scratch_operands = 0 : i64, tpu.core_type = #tpu.core_type<tc>, window_params = [{transform_indices = @transform_0, window_bounds = array<i64: 8, 32>}, {pipeline_mode = #tpu.pipeline_mode<synchronous>, transform_indices = @transform_1, window_bounds = array<i64: 32, 224>}, {pipeline_mode = #tpu.pipeline_mode<synchronous>, transform_indices = @transform_2, window_bounds = array<i64: 1, 224>}, {pipeline_mode = #tpu.pipeline_mode<synchronous>, transform_indices = @transform_3, window_bounds = array<i64: 224, 224>}, {pipeline_mode = #tpu.pipeline_mode<synchronous>, transform_indices = @transform_4, window_bounds = array<i64: 4, 224>}, {pipeline_mode = #tpu.pipeline_mode<synchronous>, transform_indices = @transform_5, window_bounds = array<i64: 224, 224>}, {pipeline_mode = #tpu.pipeline_mode<synchronous>, transform_indices = @transform_6, window_bounds = array<i64: 2, 224>}, {pipeline_mode = #tpu.pipeline_mode<synchronous>, transform_indices = @transform_7, window_bounds = array<i64: 224, 128>}, {pipeline_mode = #tpu.pipeline_mode<synchronous>, transform_indices = @transform_8, window_bounds = array<i64: 1, 128>}, {transform_indices = @transform_9, window_bounds = array<i64: 8, 128>}]} {
    %c0 = arith.constant 0 : index
    %c0_0 = arith.constant 0 : index
    %0 = vector.load %arg1[%c0, %c0_0] : memref<8x32xf32, #tpu.memory_space<vmem>>, vector<8x32xf32>
    %1 = arith.truncf %0 : vector<8x32xf32> to vector<8x32xbf16>
    %c0_1 = arith.constant 0 : index
    %c0_2 = arith.constant 0 : index
    %2 = vector.load %arg2[%c0_1, %c0_2] : memref<32x224xbf16, #tpu.memory_space<vmem>>, vector<32x224xbf16>
    %cst = arith.constant dense<0.000000e+00> : vector<8x224xf32>
    %3 = tpu.matmul %1, %2, %cst {dimension_numbers = #tpu.dot_dimension_numbers<[1], [0], [0], [1], [0, 0, 1, 1], [], []>} : vector<8x32xbf16>, vector<32x224xbf16>, vector<8x224xf32> -> vector<8x224xf32>
    %c0_3 = arith.constant 0 : index
    %c0_4 = arith.constant 0 : index
    %4 = vector.load %arg3[%c0_3, %c0_4] : memref<1x224xf32, #tpu.memory_space<vmem>>, vector<1x224xf32>
    %5 = vector.broadcast %4 : vector<1x224xf32> to vector<8x224xf32>
    %6 = arith.addf %3, %5 : vector<8x224xf32>
    %7 = arith.truncf %6 : vector<8x224xf32> to vector<8x224xbf16>
    %c0_5 = arith.constant 0 : index
    %c0_6 = arith.constant 0 : index
    %8 = vector.load %arg4[%c0_5, %c0_6] : memref<224x224xbf16, #tpu.memory_space<vmem>>, vector<224x224xbf16>
    %cst_7 = arith.constant dense<0.000000e+00> : vector<8x224xf32>
    %9 = tpu.matmul %7, %8, %cst_7 {dimension_numbers = #tpu.dot_dimension_numbers<[1], [0], [0], [1], [0, 0, 1, 1], [], []>} : vector<8x224xbf16>, vector<224x224xbf16>, vector<8x224xf32> -> vector<8x224xf32>
    %c0_8 = arith.constant 0 : index
    %c0_9 = arith.constant 0 : index
    %10 = vector.load %arg5[%c0_8, %c0_9] : memref<4x224xf32, #tpu.memory_space<vmem>>, vector<1x224xf32>
    %11 = vector.broadcast %10 : vector<1x224xf32> to vector<8x224xf32>
    %12 = arith.addf %9, %11 : vector<8x224xf32>
    %cst_10 = arith.constant 5.000000e-01 : f32
    %13 = vector.broadcast %cst_10 : f32 to vector<8x224xf32>
    %14 = arith.mulf %13, %12 : vector<8x224xf32>
    %cst_11 = arith.constant 4.471500e-02 : f32
    %15 = vector.broadcast %cst_11 : f32 to vector<8x224xf32>
    %16 = arith.mulf %15, %12 : vector<8x224xf32>
    %17 = arith.mulf %16, %12 : vector<8x224xf32>
    %18 = arith.mulf %17, %12 : vector<8x224xf32>
    %19 = arith.addf %12, %18 : vector<8x224xf32>
    %cst_12 = arith.constant 0.797884583 : f32
    %20 = vector.broadcast %cst_12 : f32 to vector<8x224xf32>
    %21 = arith.mulf %20, %19 : vector<8x224xf32>
    %22 = math.tanh %21 : vector<8x224xf32>
    %cst_13 = arith.constant 1.000000e+00 : f32
    %23 = vector.broadcast %cst_13 : f32 to vector<8x224xf32>
    %24 = arith.addf %23, %22 : vector<8x224xf32>
    %25 = arith.mulf %14, %24 : vector<8x224xf32>
    %c1 = arith.constant 1 : index
    %c0_14 = arith.constant 0 : index
    %26 = vector.load %arg5[%c1, %c0_14] : memref<4x224xf32, #tpu.memory_space<vmem>>, vector<1x224xf32>
    %27 = vector.broadcast %26 : vector<1x224xf32> to vector<8x224xf32>
    %28 = arith.mulf %6, %27 : vector<8x224xf32>
    %c2 = arith.constant 2 : index
    %c0_15 = arith.constant 0 : index
    %29 = vector.load %arg5[%c2, %c0_15] : memref<4x224xf32, #tpu.memory_space<vmem>>, vector<1x224xf32>
    %30 = vector.broadcast %29 : vector<1x224xf32> to vector<8x224xf32>
    %31 = arith.mulf %25, %30 : vector<8x224xf32>
    %32 = arith.addf %28, %31 : vector<8x224xf32>
    %c3 = arith.constant 3 : index
    %c0_16 = arith.constant 0 : index
    %33 = vector.load %arg5[%c3, %c0_16] : memref<4x224xf32, #tpu.memory_space<vmem>>, vector<1x224xf32>
    %34 = vector.broadcast %33 : vector<1x224xf32> to vector<8x224xf32>
    %35 = arith.addf %32, %34 : vector<8x224xf32>
    %36 = arith.truncf %35 : vector<8x224xf32> to vector<8x224xbf16>
    %c0_17 = arith.constant 0 : index
    %c0_18 = arith.constant 0 : index
    %37 = vector.load %arg6[%c0_17, %c0_18] : memref<224x224xbf16, #tpu.memory_space<vmem>>, vector<224x224xbf16>
    %cst_19 = arith.constant dense<0.000000e+00> : vector<8x224xf32>
    %38 = tpu.matmul %36, %37, %cst_19 {dimension_numbers = #tpu.dot_dimension_numbers<[1], [0], [0], [1], [0, 0, 1, 1], [], []>} : vector<8x224xbf16>, vector<224x224xbf16>, vector<8x224xf32> -> vector<8x224xf32>
    %c0_20 = arith.constant 0 : index
    %c0_21 = arith.constant 0 : index
    %39 = vector.load %arg7[%c0_20, %c0_21] : memref<2x224xf32, #tpu.memory_space<vmem>>, vector<1x224xf32>
    %40 = vector.broadcast %39 : vector<1x224xf32> to vector<8x224xf32>
    %41 = arith.addf %38, %40 : vector<8x224xf32>
    %cst_22 = arith.constant 5.000000e-01 : f32
    %42 = vector.broadcast %cst_22 : f32 to vector<8x224xf32>
    %43 = arith.mulf %42, %41 : vector<8x224xf32>
    %cst_23 = arith.constant 4.471500e-02 : f32
    %44 = vector.broadcast %cst_23 : f32 to vector<8x224xf32>
    %45 = arith.mulf %44, %41 : vector<8x224xf32>
    %46 = arith.mulf %45, %41 : vector<8x224xf32>
    %47 = arith.mulf %46, %41 : vector<8x224xf32>
    %48 = arith.addf %41, %47 : vector<8x224xf32>
    %cst_24 = arith.constant 0.797884583 : f32
    %49 = vector.broadcast %cst_24 : f32 to vector<8x224xf32>
    %50 = arith.mulf %49, %48 : vector<8x224xf32>
    %51 = math.tanh %50 : vector<8x224xf32>
    %cst_25 = arith.constant 1.000000e+00 : f32
    %52 = vector.broadcast %cst_25 : f32 to vector<8x224xf32>
    %53 = arith.addf %52, %51 : vector<8x224xf32>
    %54 = arith.mulf %43, %53 : vector<8x224xf32>
    %c1_26 = arith.constant 1 : index
    %c0_27 = arith.constant 0 : index
    %55 = vector.load %arg7[%c1_26, %c0_27] : memref<2x224xf32, #tpu.memory_space<vmem>>, vector<1x224xf32>
    %56 = vector.broadcast %55 : vector<1x224xf32> to vector<8x224xf32>
    %57 = arith.mulf %54, %56 : vector<8x224xf32>
    %58 = arith.addf %35, %57 : vector<8x224xf32>
    %59 = arith.truncf %58 : vector<8x224xf32> to vector<8x224xbf16>
    %c0_28 = arith.constant 0 : index
    %c0_29 = arith.constant 0 : index
    %60 = vector.load %arg8[%c0_28, %c0_29] : memref<224x128xbf16, #tpu.memory_space<vmem>>, vector<224x128xbf16>
    %cst_30 = arith.constant dense<0.000000e+00> : vector<8x128xf32>
    %61 = tpu.matmul %59, %60, %cst_30 {dimension_numbers = #tpu.dot_dimension_numbers<[1], [0], [0], [1], [0, 0, 1, 1], [], []>} : vector<8x224xbf16>, vector<224x128xbf16>, vector<8x128xf32> -> vector<8x128xf32>
    %c0_31 = arith.constant 0 : index
    %c0_32 = arith.constant 0 : index
    %62 = vector.load %arg9[%c0_31, %c0_32] : memref<1x128xf32, #tpu.memory_space<vmem>>, vector<1x128xf32>
    %63 = vector.broadcast %62 : vector<1x128xf32> to vector<8x128xf32>
    %64 = arith.addf %61, %63 : vector<8x128xf32>
    %c0_33 = arith.constant 0 : index
    %c0_34 = arith.constant 0 : index
    %65 = vector.load %arg10[%c0_33, %c0_34] : memref<8x128xf32, #tpu.memory_space<vmem>>, vector<8x128xf32>
    tpu.vector_store %arg10[%c0_33, %c0_34], %64 {strides = array<i32>} : memref<8x128xf32, #tpu.memory_space<vmem>>, vector<8x128xf32>,
    return
  }
  func.func @transform_0(%arg0: i32) -> (i32, i32) {
    %c0_i32 = arith.constant 0 : i32
    %c0_i32_0 = arith.constant 0 : i32
    return %arg0, %c0_i32 : i32, i32
  }
  func.func @transform_1(%arg0: i32) -> (i32, i32) {
    %c0_i32 = arith.constant 0 : i32
    %c0_i32_0 = arith.constant 0 : i32
    %c0_i32_1 = arith.constant 0 : i32
    return %c0_i32, %c0_i32_0 : i32, i32
  }
  func.func @transform_2(%arg0: i32) -> (i32, i32) {
    %c0_i32 = arith.constant 0 : i32
    %c0_i32_0 = arith.constant 0 : i32
    %c0_i32_1 = arith.constant 0 : i32
    return %c0_i32, %c0_i32_0 : i32, i32
  }
  func.func @transform_3(%arg0: i32) -> (i32, i32) {
    %c0_i32 = arith.constant 0 : i32
    %c0_i32_0 = arith.constant 0 : i32
    %c0_i32_1 = arith.constant 0 : i32
    return %c0_i32, %c0_i32_0 : i32, i32
  }
  func.func @transform_4(%arg0: i32) -> (i32, i32) {
    %c0_i32 = arith.constant 0 : i32
    %c0_i32_0 = arith.constant 0 : i32
    %c0_i32_1 = arith.constant 0 : i32
    return %c0_i32, %c0_i32_0 : i32, i32
  }
  func.func @transform_5(%arg0: i32) -> (i32, i32) {
    %c0_i32 = arith.constant 0 : i32
    %c0_i32_0 = arith.constant 0 : i32
    %c0_i32_1 = arith.constant 0 : i32
    return %c0_i32, %c0_i32_0 : i32, i32
  }
  func.func @transform_6(%arg0: i32) -> (i32, i32) {
    %c0_i32 = arith.constant 0 : i32
    %c0_i32_0 = arith.constant 0 : i32
    %c0_i32_1 = arith.constant 0 : i32
    return %c0_i32, %c0_i32_0 : i32, i32
  }
  func.func @transform_7(%arg0: i32) -> (i32, i32) {
    %c0_i32 = arith.constant 0 : i32
    %c0_i32_0 = arith.constant 0 : i32
    %c0_i32_1 = arith.constant 0 : i32
    return %c0_i32, %c0_i32_0 : i32, i32
  }
  func.func @transform_8(%arg0: i32) -> (i32, i32) {
    %c0_i32 = arith.constant 0 : i32
    %c0_i32_0 = arith.constant 0 : i32
    %c0_i32_1 = arith.constant 0 : i32
    return %c0_i32, %c0_i32_0 : i32, i32
  }
  func.func @transform_9(%arg0: i32) -> (i32, i32) {
    %c0_i32 = arith.constant 0 : i32
    %c0_i32_0 = arith.constant 0 : i32
    return %arg0, %c0_i32 : i32, i32
  }
}

</mosaic_0001>

<llo_original>
// kernel: convtimenet_forward.1
$region0: #{convtimenet_forward.1}
  #allocation0 [shape = 'u32[]', space=smem, size = 0x4, offset = 0x4, fixed_abs, tag = 'smem constant byte address 0x4 - core index']
  #allocation1 [shape = 'u32[144,128]{1,0:T(1,128)}', space=vmem, size = 0x12000, scoped, tag = 'internal scratch']
  %s0 = inlined_call_operand.hbm [shape: f32[8,32], index: 0, kind: input, shape index: {}]
  %s1 = inlined_call_operand.vmem [shape: bf16[32,224], index: 1, kind: input, shape index: {}]
  %s2 = inlined_call_operand.vmem [shape: f32[1,224], index: 2, kind: input, shape index: {}]
  %s3 = inlined_call_operand.hbm [shape: bf16[224,224], index: 3, kind: input, shape index: {}]
  %s4 = inlined_call_operand.hbm [shape: f32[4,224], index: 4, kind: input, shape index: {}]
  %s5 = inlined_call_operand.hbm [shape: bf16[224,224], index: 5, kind: input, shape index: {}]
  %s6 = inlined_call_operand.hbm [shape: f32[2,224], index: 6, kind: input, shape index: {}]
  %s7 = inlined_call_operand.hbm [shape: bf16[224,128], index: 7, kind: input, shape index: {}]
  %s8 = inlined_call_operand.hbm [shape: f32[1,128], index: 8, kind: input, shape index: {}]
  %s9 = inlined_call_operand.hbm [shape: f32[8,128], index: 9, kind: output, shape index: {}]
  %s10 = sld [smem:[#allocation0]]
  $region74: #{convtimenet_forward.1} parent=0
    _
  %s12 = ssub.s32 1, %s10
  %s13 = scalar_select 0, %s12, %s10
  $region1: #{convtimenet_forward.1} parent=0
    #allocation2 [shape = 'u8[4096]{0}', space=vmem, size = 0x1000, scoped, tag = 'input window, operand 0, single buffered']
    #allocation3 [shape = 's32[1]{0}', space=sflag, size = 0x4, scoped, tag = 'scoped memory for convtimenet_forward.1']
    #allocation4 [shape = 's32[1]{0}', space=sflag, size = 0x4, scoped, tag = 'scoped memory for convtimenet_forward.1']
    #allocation5 [shape = 'u8[114688]{0}', space=vmem, size = 0x1c000, scoped, tag = 'input window, operand 3, single buffered']
    #allocation6 [shape = 's32[1]{0}', space=sflag, size = 0x4, scoped, tag = 'scoped memory for convtimenet_forward.1']
    #allocation7 [shape = 'u8[4096]{0}', space=vmem, size = 0x1000, scoped, tag = 'input window, operand 4, single buffered']
    #allocation8 [shape = 'u8[114688]{0}', space=vmem, size = 0x1c000, scoped, tag = 'input window, operand 5, single buffered']
    #allocation9 [shape = 's32[1]{0}', space=sflag, size = 0x4, scoped, tag = 'scoped memory for convtimenet_forward.1']
    #allocation10 [shape = 'u8[2048]{0}', space=vmem, size = 0x800, scoped, tag = 'input window, operand 6, single buffered']
    #allocation11 [shape = 'u8[57344]{0}', space=vmem, size = 0xe000, scoped, tag = 'input window, operand 7, single buffered']
    #allocation12 [shape = 's32[1]{0}', space=sflag, size = 0x4, scoped, tag = 'scoped memory for convtimenet_forward.1']
    #allocation13 [shape = 'u8[512]{0}', space=vmem, size = 0x400, scoped, tag = 'input window, operand 8, single buffered']
    #allocation14 [shape = 'u8[4096]{0}', space=vmem, size = 0x1000, scoped, tag = 'output window, operand 0, single buffered']
    %14 = vsyncpa [#allocation3], 0
    %15 = vsyncpa [#allocation6], 0
    %16 = vsyncpa [#allocation9], 0
    %17 = vsyncpa [#allocation12], 0
    %18 = vsyncpa [#allocation4], 0
    // Predicated region
    $region2: #{convtimenet_forward.1} parent=1 // pred_check
      _
    $region3: #{convtimenet_forward.1} parent=1 // pred_check_branch
      %20 = sbr.rel (0) target = $region5
    $region4: #{convtimenet_forward.1} parent=1 // pred_region
      %s22 = ssub.s32 128, 128
      %23 = vsyncadd [#allocation3], %s22
      %s25 = sshll.u32 [#allocation2], 4
      %s26 = int_to_ptr.vmem [resolvable:$true] %s25
      %28 = dma.hbm_to_vmem [thread:$0]  %s0, 128, %s26, [#allocation3]
    $region5: #{convtimenet_forward.1} parent=1 // pred_fallthru
      _
    // Predicated region
    $region6: #{convtimenet_forward.1} parent=1 // pred_check
      _
    $region7: #{convtimenet_forward.1} parent=1 // pred_check_branch
      %30 = sbr.rel (0) target = $region9
    $region8: #{convtimenet_forward.1} parent=1 // pred_region
      _
    $region9: #{convtimenet_forward.1} parent=1 // pred_fallthru
      _
    // Predicated region
    $region10: #{convtimenet_forward.1} parent=1 // pred_check
      _
    $region11: #{convtimenet_forward.1} parent=1 // pred_check_branch
      %32 = sbr.rel (0) target = $region13
    $region12: #{convtimenet_forward.1} parent=1 // pred_region
      _
    $region13: #{convtimenet_forward.1} parent=1 // pred_fallthru
      _
    // Predicated region
    $region14: #{convtimenet_forward.1} parent=1 // pred_check
      _
    $region15: #{convtimenet_forward.1} parent=1 // pred_check_branch
      %34 = sbr.rel (0) target = $region17
    $region16: #{convtimenet_forward.1} parent=1 // pred_region
      %s36 = ssub.s32 3584, 3584
      %37 = vsyncadd [#allocation6], %s36
      %s38 = sshll.u32 [#allocation5], 4
      %s39 = int_to_ptr.vmem [resolvable:$true] %s38
      %44 = dma.hbm_to_vmem [thread:$0]  %s3, 3584, %s39, [#allocation6], 128, 128, 8
    $region17: #{convtimenet_forward.1} parent=1 // pred_fallthru
      _
    // Predicated region
    $region18: #{convtimenet_forward.1} parent=1 // pred_check
      _
    $region19: #{convtimenet_forward.1} parent=1 // pred_check_branch
      %46 = sbr.rel (0) target = $region21
    $region20: #{convtimenet_forward.1} parent=1 // pred_region
      %s48 = ssub.s32 128, 128
      %49 = vsyncadd [#allocation6], %s48
      %s51 = sshll.u32 [#allocation7], 4
      %s52 = int_to_ptr.vmem [resolvable:$true] %s51
      %54 = dma.hbm_to_vmem [thread:$0]  %s4, 128, %s52, [#allocation6]
    $region21: #{convtimenet_forward.1} parent=1 // pred_fallthru
      _
    // Predicated region
    $region22: #{convtimenet_forward.1} parent=1 // pred_check
      _
    $region23: #{convtimenet_forward.1} parent=1 // pred_check_branch
      %56 = sbr.rel (0) target = $region25
    $region24: #{convtimenet_forward.1} parent=1 // pred_region
      %s58 = ssub.s32 3584, 3584
      %59 = vsyncadd [#allocation9], %s58
      %s60 = sshll.u32 [#allocation8], 4
      %s61 = int_to_ptr.vmem [resolvable:$true] %s60
      %66 = dma.hbm_to_vmem [thread:$0]  %s5, 3584, %s61, [#allocation9], 128, 128, 8
    $region25: #{convtimenet_forward.1} parent=1 // pred_fallthru
      _
    // Predicated region
    $region26: #{convtimenet_forward.1} parent=1 // pred_check
      _
    $region27: #{convtimenet_forward.1} parent=1 // pred_check_branch
      %68 = sbr.rel (0) target = $region29
    $region28: #{convtimenet_forward.1} parent=1 // pred_region
      %s70 = ssub.s32 64, 64
      %71 = vsyncadd [#allocation9], %s70
      %s73 = sshll.u32 [#allocation10], 4
      %s74 = int_to_ptr.vmem [resolvable:$true] %s73
      %76 = dma.hbm_to_vmem [thread:$0]  %s6, 64, %s74, [#allocation9]
    $region29: #{convtimenet_forward.1} parent=1 // pred_fallthru
      _
    // Predicated region
    $region30: #{convtimenet_forward.1} parent=1 // pred_check
      _
    $region31: #{convtimenet_forward.1} parent=1 // pred_check_branch
      %78 = sbr.rel (0) target = $region33
    $region32: #{convtimenet_forward.1} parent=1 // pred_region
      %s80 = ssub.s32 1792, 1792
      %81 = vsyncadd [#allocation12], %s80
      %s82 = sshll.u32 [#allocation11], 4
      %s83 = int_to_ptr.vmem [resolvable:$true] %s82
      %88 = dma.hbm_to_vmem [thread:$0]  %s7, 1792, %s83, [#allocation12], 64, 64, 4
    $region33: #{convtimenet_forward.1} parent=1 // pred_fallthru
      _
    // Predicated region
    $region34: #{convtimenet_forward.1} parent=1 // pred_check
      _
    $region35: #{convtimenet_forward.1} parent=1 // pred_check_branch
      %90 = sbr.rel (0) target = $region37
    $region36: #{convtimenet_forward.1} parent=1 // pred_region
      %s92 = ssub.s32 16, 16
      %93 = vsyncadd [#allocation12], %s92
      %s95 = sshll.u32 [#allocation13], 4
      %s96 = int_to_ptr.vmem [resolvable:$true] %s95
      %98 = dma.hbm_to_vmem [thread:$0]  %s8, 16, %s96, [#allocation12]
    $region37: #{convtimenet_forward.1} parent=1 // pred_fallthru
      _
    // Predicated region
    $region38: #{convtimenet_forward.1} parent=1 // pred_check
      _
    $region39: #{convtimenet_forward.1} parent=1 // pred_check_branch
      %100 = sbr.rel (0) target = $region41
    $region40: #{convtimenet_forward.1} parent=1 // pred_region
      %101 = dma.done [#allocation3], 128
    $region41: #{convtimenet_forward.1} parent=1 // pred_fallthru
      _
    // Predicated region
    $region42: #{convtimenet_forward.1} parent=1 // pred_check
      _
    $region43: #{convtimenet_forward.1} parent=1 // pred_check_branch
      %103 = sbr.rel (0) target = $region45
    $region44: #{convtimenet_forward.1} parent=1 // pred_region
      %104 = dma.done [#allocation6], 3584
    $region45: #{convtimenet_forward.1} parent=1 // pred_fallthru
      _
    // Predicated region
    $region46: #{convtimenet_forward.1} parent=1 // pred_check
      _
    $region47: #{convtimenet_forward.1} parent=1 // pred_check_branch
      %106 = sbr.rel (0) target = $region49
    $region48: #{convtimenet_forward.1} parent=1 // pred_region
      %107 = dma.done [#allocation6], 128
    $region49: #{convtimenet_forward.1} parent=1 // pred_fallthru
      _
    // Predicated region
    $region50: #{convtimenet_forward.1} parent=1 // pred_check
      _
    $region51: #{convtimenet_forward.1} parent=1 // pred_check_branch
      %109 = sbr.rel (0) target = $region53
    $region52: #{convtimenet_forward.1} parent=1 // pred_region
      %110 = dma.done [#allocation9], 3584
    $region53: #{convtimenet_forward.1} parent=1 // pred_fallthru
      _
    // Predicated region
    $region54: #{convtimenet_forward.1} parent=1 // pred_check
      _
    $region55: #{convtimenet_forward.1} parent=1 // pred_check_branch
      %112 = sbr.rel (0) target = $region57
    $region56: #{convtimenet_forward.1} parent=1 // pred_region
      %113 = dma.done [#allocation9], 64
    $region57: #{convtimenet_forward.1} parent=1 // pred_fallthru
      _
    // Predicated region
    $region58: #{convtimenet_forward.1} parent=1 // pred_check
      _
    $region59: #{convtimenet_forward.1} parent=1 // pred_check_branch
      %115 = sbr.rel (0) target = $region61
    $region60: #{convtimenet_forward.1} parent=1 // pred_region
      %116 = dma.done [#allocation12], 1792
    $region61: #{convtimenet_forward.1} parent=1 // pred_fallthru
      _
    // Predicated region
    $region62: #{convtimenet_forward.1} parent=1 // pred_check
      _
    $region63: #{convtimenet_forward.1} parent=1 // pred_check_branch
      %118 = sbr.rel (0) target = $region65
    $region64: #{convtimenet_forward.1} parent=1 // pred_region
      %119 = dma.done [#allocation12], 16
    $region65: #{convtimenet_forward.1} parent=1 // pred_fallthru
      _
    %v121 = vld [vmem:[#allocation2] sm:$0xff]
    %v122 = vpack.c.bf16 %v121, %v121
    %v123 = vld [vmem:[%s1] sm:$0xff]
    %v124 = vld [vmem:[%s1 + $0x8] sm:$0xff]
    %v125 = vld [vmem:[%s1 + $0x10] sm:$0xff]
    %v126 = vld [vmem:[%s1 + $0x18] sm:$0xff]
    %v127 = vld [vmem:[%s2] sm:$0x3]
    %v129 = vlaneseq
    %v130 = vshrl.u32 %v129, 7
    %v131 = vsub.s32 0, %v130
    %v132 = vrot.slane %v127, %v131
    %v133 = vlaneseq
    %v134 = vshrl.u32 %v133, 7
    %v135 = vsub.s32 1, %v134
    %v136 = vrot.slane %v127, %v135
    %v143 = vunpack.c.l.b16 %v123
    %v144 = vunpack.c.h.b16 %v123
    %v145 = vunpack.c.l.b16 %v124
    %v146 = vunpack.c.h.b16 %v124
    %v147 = vunpack.c.l.b16 %v125
    %v148 = vunpack.c.h.b16 %v125
    %v149 = vunpack.c.l.b16 %v126
    %v150 = vunpack.c.h.b16 %v126
    %v151 = vpack.c.b16 %v145, %v143
    %v152 = vpack.c.b16 %v146, %v144
    %v153 = vpack.c.b16 %v149, %v147
    %v154 = vpack.c.b16 %v150, %v148
    %vm159 = vcmask 261120
    %v161 = vsel %vm159, %v122, 0
    %163 = vmatprep.subr.bf16.mxu0 %v152
    %164 = vmatpush1.bf16.msra.mxu0 %v151
    %165 = vmatprep.subr.bf16.mxu0 %v154
    %166 = vmatpush1.bf16.msra.mxu0 %v153
    %167 = vmatprep.subr.bf16.mxu0 0
    %168 = vmatpush1.bf16.msra.mxu0 0
    %169 = vmatprep.subr.bf16.mxu0 0
    %170 = vmatpush1.bf16.msra.mxu0 0
    %171 = vmatprep.subr.bf16.mxu0 0
    %172 = vmatpush1.bf16.msra.mxu0 0
    %173 = vmatprep.subr.bf16.mxu0 0
    %174 = vmatpush1.bf16.msra.mxu0 0
    %175 = vmatprep.subr.bf16.mxu0 0
    %176 = vmatpush1.bf16.msra.mxu0 0
    %177 = vmatprep.subr.bf16.mxu0 0
    %178 = vmatpush1.bf16.msra.mxu0 0
    %179 = vmatprep.subr.bf16.mxu0 0
    %180 = vmatpush1.bf16.msra.mxu0 0
    %181 = vmatprep.subr.bf16.mxu0 0
    %182 = vmatpush1.bf16.msra.mxu0 0
    %183 = vmatprep.subr.bf16.mxu0 0
    %184 = vmatpush1.bf16.msra.mxu0 0
    %185 = vmatprep.subr.bf16.mxu0 0
    %186 = vmatpush1.bf16.msra.mxu0 0
    %187 = vmatprep.subr.bf16.mxu0 0
    %188 = vmatpush1.bf16.msra.mxu0 0
    %189 = vmatprep.subr.bf16.mxu0 0
    %190 = vmatpush1.bf16.msra.mxu0 0
    %191 = vmatprep.subr.bf16.mxu0 0
    %192 = vmatpush1.bf16.msra.mxu0 0
    %193 = vmatprep.subr.bf16.mxu0 0
    %194 = vmatpush1.bf16.msra.mxu0 0
    %195 = vmatprep.mubr.bf16.mxu0 0
    %196 = vmatmul.mubr.bf16.gmra.mrb[0].mxu0 %v161
    %v197 = vpop.f32.mrb[0].mxu0
    %v198 = vadd.f32 %v132, %v197
    %v199 = vpop.f32.mrb[0].mxu0
    %v200 = vadd.f32 %v136, %v199
    %v201 = vpop.f32.mrb[0].mxu0
    %v202 = vpop.f32.mrb[0].mxu0
    %203 = vdwg.mxu0
    %v204 = vpack.c.bf16 %v198, %v198
    %v205 = vpack.c.bf16 %v200, %v200
    %v206 = vld [vmem:[#allocation5] sm:$0xff]
    %v207 = vld [vmem:[#allocation5 + $0x8] sm:$0xff]
    %v208 = vld [vmem:[#allocation5 + $0x10] sm:$0xff]
    %v209 = vld [vmem:[#allocation5 + $0x18] sm:$0xff]
    %v210 = vld [vmem:[#allocation5 + $0x20] sm:$0xff]
    %v211 = vld [vmem:[#allocation5 + $0x28] sm:$0xff]
    %v212 = vld [vmem:[#allocation5 + $0x30] sm:$0xff]
    %v213 = vld [vmem:[#allocation5 + $0x38] sm:$0xff]
    %v214 = vld [vmem:[#allocation5 + $0x40] sm:$0xff]
    %v215 = vld [vmem:[#allocation5 + $0x48] sm:$0xff]
    %v216 = vld [vmem:[#allocation5 + $0x50] sm:$0xff]
    %v217 = vld [vmem:[#allocation5 + $0x58] sm:$0xff]
    %v218 = vld [vmem:[#allocation5 + $0x60] sm:$0xff]
    %v219 = vld [vmem:[#allocation5 + $0x68] sm:$0xff]
    %v220 = vld [vmem:[#allocation5 + $0x70] sm:$0xff]
    %v221 = vld [vmem:[#allocation5 + $0x78] sm:$0xff]
    %v222 = vld [vmem:[#allocation5 + $0x80] sm:$0xff]
    %v223 = vld [vmem:[#allocation5 + $0x88] sm:$0xff]
    %v224 = vld [vmem:[#allocation5 + $0x90] sm:$0xff]
    %v225 = vld [vmem:[#allocation5 + $0x98] sm:$0xff]
    %v226 = vld [vmem:[#allocation5 + $0xa0] sm:$0xff]
    %v227 = vld [vmem:[#allocation5 + $0xa8] sm:$0xff]
    %v228 = vld [vmem:[#allocation5 + $0xb0] sm:$0xff]
    %v229 = vld [vmem:[#allocation5 + $0xb8] sm:$0xff]
    %v230 = vld [vmem:[#allocation5 + $0xc0] sm:$0xff]
    %v231 = vld [vmem:[#allocation5 + $0xc8] sm:$0xff]
    %v232 = vld [vmem:[#allocation5 + $0xd0] sm:$0xff]
    %v233 = vld [vmem:[#allocation5 + $0xd8] sm:$0xff]
    %v234 = vld [vmem:[#allocation7] ss:$4 sm:$0x3]
    %v236 = vlaneseq
    %v237 = vshrl.u32 %v236, 7
    %v238 = vsub.s32 0, %v237
    %v239 = vrot.slane %v234, %v238
    %v240 = vlaneseq
    %v241 = vshrl.u32 %v240, 7
    %v242 = vsub.s32 1, %v241
    %v243 = vrot.slane %v234, %v242
    %v274 = vunpack.c.l.b16 %v206
    %v275 = vunpack.c.h.b16 %v206
    %v276 = vunpack.c.l.b16 %v207
    %v277 = vunpack.c.h.b16 %v207
    %v278 = vunpack.c.l.b16 %v208
    %v279 = vunpack.c.h.b16 %v208
    %v280 = vunpack.c.l.b16 %v209
    %v281 = vunpack.c.h.b16 %v209
    %v282 = vunpack.c.l.b16 %v210
    %v283 = vunpack.c.h.b16 %v210
    %v284 = vunpack.c.l.b16 %v211
    %v285 = vunpack.c.h.b16 %v211
    %v286 = vunpack.c.l.b16 %v212
    %v287 = vunpack.c.h.b16 %v212
    %v288 = vunpack.c.l.b16 %v213
    %v289 = vunpack.c.h.b16 %v213
    %v290 = vunpack.c.l.b16 %v214
    %v291 = vunpack.c.h.b16 %v214
    %v292 = vunpack.c.l.b16 %v215
    %v293 = vunpack.c.h.b16 %v215
    %v294 = vunpack.c.l.b16 %v216
    %v295 = vunpack.c.h.b16 %v216
    %v296 = vunpack.c.l.b16 %v217
    %v297 = vunpack.c.h.b16 %v217
    %v298 = vunpack.c.l.b16 %v218
    %v299 = vunpack.c.h.b16 %v218
    %v300 = vunpack.c.l.b16 %v219
    %v301 = vunpack.c.h.b16 %v219
    %v302 = vunpack.c.l.b16 %v220
    %v303 = vunpack.c.h.b16 %v220
    %v304 = vunpack.c.l.b16 %v221
    %v305 = vunpack.c.h.b16 %v221
    %v306 = vunpack.c.l.b16 %v222
    %v307 = vunpack.c.h.b16 %v222
    %v308 = vunpack.c.l.b16 %v223
    %v309 = vunpack.c.h.b16 %v223
    %v310 = vunpack.c.l.b16 %v224
    %v311 = vunpack.c.h.b16 %v224
    %v312 = vunpack.c.l.b16 %v225
    %v313 = vunpack.c.h.b16 %v225
    %v314 = vunpack.c.l.b16 %v226
    %v315 = vunpack.c.h.b16 %v226
    %v316 = vunpack.c.l.b16 %v227
    %v317 = vunpack.c.h.b16 %v227
    %v318 = vunpack.c.l.b16 %v228
    %v319 = vunpack.c.h.b16 %v228
    %v320 = vunpack.c.l.b16 %v229
    %v321 = vunpack.c.h.b16 %v229
    %v322 = vunpack.c.l.b16 %v230
    %v323 = vunpack.c.h.b16 %v230
    %v324 = vunpack.c.l.b16 %v231
    %v325 = vunpack.c.h.b16 %v231
    %v326 = vunpack.c.l.b16 %v232
    %v327 = vunpack.c.h.b16 %v232
    %v328 = vunpack.c.l.b16 %v233
    %v329 = vunpack.c.h.b16 %v233
    %v330 = vpack.c.b16 %v276, %v274
    %v331 = vpack.c.b16 %v277, %v275
    %v332 = vpack.c.b16 %v280, %v278
    %v333 = vpack.c.b16 %v281, %v279
    %v334 = vpack.c.b16 %v284, %v282
    %v335 = vpack.c.b16 %v285, %v283
    %v336 = vpack.c.b16 %v288, %v286
    %v337 = vpack.c.b16 %v289, %v287
    %v338 = vpack.c.b16 %v292, %v290
    %v339 = vpack.c.b16 %v293, %v291
    %v340 = vpack.c.b16 %v296, %v294
    %v341 = vpack.c.b16 %v297, %v295
    %v342 = vpack.c.b16 %v300, %v298
    %v343 = vpack.c.b16 %v301, %v299
    %v344 = vpack.c.b16 %v304, %v302
    %v345 = vpack.c.b16 %v305, %v303
    %v346 = vpack.c.b16 %v308, %v306
    %v347 = vpack.c.b16 %v309, %v307
    %v348 = vpack.c.b16 %v312, %v310
    %v349 = vpack.c.b16 %v313, %v311
    %v350 = vpack.c.b16 %v316, %v314
    %v351 = vpack.c.b16 %v317, %v315
    %v352 = vpack.c.b16 %v320, %v318
    %v353 = vpack.c.b16 %v321, %v319
    %v354 = vpack.c.b16 %v324, %v322
    %v355 = vpack.c.b16 %v325, %v323
    %v356 = vpack.c.b16 %v328, %v326
    %v357 = vpack.c.b16 %v329, %v327
    %vm386 = vcmask 785408
    %v388 = vsel %vm386, %v205, 0
    %390 = vmatprep.subr.bf16.mxu0 %v331
    %391 = vmatpush1.bf16.msra.mxu0 %v330
    %392 = vmatprep.subr.bf16.mxu0 %v333
    %393 = vmatpush1.bf16.msra.mxu0 %v332
    %394 = vmatprep.subr.bf16.mxu0 %v335
    %395 = vmatpush1.bf16.msra.mxu0 %v334
    %396 = vmatprep.subr.bf16.mxu0 %v337
    %397 = vmatpush1.bf16.msra.mxu0 %v336
    %398 = vmatprep.subr.bf16.mxu0 %v339
    %399 = vmatpush1.bf16.msra.mxu0 %v338
    %400 = vmatprep.subr.bf16.mxu0 %v341
    %401 = vmatpush1.bf16.msra.mxu0 %v340
    %402 = vmatprep.subr.bf16.mxu0 %v343
    %403 = vmatpush1.bf16.msra.mxu0 %v342
    %404 = vmatprep.subr.bf16.mxu0 %v345
    %405 = vmatpush1.bf16.msra.mxu0 %v344
    %406 = vmatprep.subr.bf16.mxu0 %v347
    %407 = vmatpush1.bf16.msra.mxu0 %v346
    %408 = vmatprep.subr.bf16.mxu0 %v349
    %409 = vmatpush1.bf16.msra.mxu0 %v348
    %410 = vmatprep.subr.bf16.mxu0 %v351
    %411 = vmatpush1.bf16.msra.mxu0 %v350
    %412 = vmatprep.subr.bf16.mxu0 %v353
    %413 = vmatpush1.bf16.msra.mxu0 %v352
    %414 = vmatprep.subr.bf16.mxu0 %v355
    %415 = vmatpush1.bf16.msra.mxu0 %v354
    %416 = vmatprep.subr.bf16.mxu0 %v357
    %417 = vmatpush1.bf16.msra.mxu0 %v356
    %418 = vmatprep.subr.bf16.mxu0 0
    %419 = vmatpush1.bf16.msra.mxu0 0
    %420 = vmatprep.subr.bf16.mxu0 0
    %421 = vmatpush1.bf16.msra.mxu0 0
    %422 = vmatprep.mubr.bf16.mxu0 %v388
    %423 = vmatmul.mubr.bf16.gmra.mrb[0].mxu0 %v204
    %v424 = vpop.f32.mrb[0].mxu0
    %v425 = vadd.f32 %v239, %v424
    %v426 = vpop.f32.mrb[0].mxu0
    %v427 = vadd.f32 %v243, %v426
    %v428 = vpop.f32.mrb[0].mxu0
    %v429 = vpop.f32.mrb[0].mxu0
    %430 = vdwg.mxu0
    %v431 = vmul.f32 %v425, 0.5
    %v432 = vmul.f32 %v427, 0.5
    %v433 = vmul.f32 %v425, 0.044715
    %v434 = vmul.f32 %v427, 0.044715
    %v435 = vmul.f32 %v433, %v425
    %v436 = vmul.f32 %v434, %v427
    %v437 = vmul.f32 %v435, %v425
    %v438 = vmul.f32 %v436, %v427
    %v439 = vadd.f32 %v425, %v437
    %v440 = vadd.f32 %v427, %v438
    %v441 = vmul.f32 %v439, 0.7978846
    %v442 = vmul.f32 %v440, 0.7978846
    %v443 = vtanh.pop %v441
    %v444 = vtanh.pop %v442
    %v445 = vadd.f32 %v443, 1.0
    %v446 = vadd.f32 %v444, 1.0
    %v447 = vmul.f32 %v431, %v445
    %v448 = vmul.f32 %v432, %v446
    %s449 = scalar_lea.vmem [#allocation7], 1
    %v450 = vld [vmem:[%s449] ss:$4 sm:$0x3]
    %v452 = vlaneseq
    %v453 = vshrl.u32 %v452, 7
    %v454 = vsub.s32 0, %v453
    %v455 = vrot.slane %v450, %v454
    %v456 = vlaneseq
    %v457 = vshrl.u32 %v456, 7
    %v458 = vsub.s32 1, %v457
    %v459 = vrot.slane %v450, %v458
    %v462 = vmul.f32 %v198, %v455
    %v463 = vmul.f32 %v200, %v459
    %s464 = scalar_lea.vmem [#allocation7], 2
    %v465 = vld [vmem:[%s464] ss:$4 sm:$0x3]
    %v467 = vlaneseq
    %v468 = vshrl.u32 %v467, 7
    %v469 = vsub.s32 0, %v468
    %v470 = vrot.slane %v465, %v469
    %v471 = vlaneseq
    %v472 = vshrl.u32 %v471, 7
    %v473 = vsub.s32 1, %v472
    %v474 = vrot.slane %v465, %v473
    %v477 = vmul.f32 %v447, %v470
    %v478 = vmul.f32 %v448, %v474
    %v479 = vadd.f32 %v462, %v477
    %v480 = vadd.f32 %v463, %v478
    %s481 = scalar_lea.vmem [#allocation7], 3
    %v482 = vld [vmem:[%s481] ss:$4 sm:$0x3]
    %v484 = vlaneseq
    %v485 = vshrl.u32 %v484, 7
    %v486 = vsub.s32 0, %v485
    %v487 = vrot.slane %v482, %v486
    %v488 = vlaneseq
    %v489 = vshrl.u32 %v488, 7
    %v490 = vsub.s32 1, %v489
    %v491 = vrot.slane %v482, %v490
    %v494 = vadd.f32 %v479, %v487
    %v495 = vadd.f32 %v480, %v491
    %v496 = vpack.c.bf16 %v494, %v494
    %v497 = vpack.c.bf16 %v495, %v495
    %v498 = vld [vmem:[#allocation8] sm:$0xff]
    %v499 = vld [vmem:[#allocation8 + $0x8] sm:$0xff]
    %v500 = vld [vmem:[#allocation8 + $0x10] sm:$0xff]
    %v501 = vld [vmem:[#allocation8 + $0x18] sm:$0xff]
    %v502 = vld [vmem:[#allocation8 + $0x20] sm:$0xff]
    %v503 = vld [vmem:[#allocation8 + $0x28] sm:$0xff]
    %v504 = vld [vmem:[#allocation8 + $0x30] sm:$0xff]
    %v505 = vld [vmem:[#allocation8 + $0x38] sm:$0xff]
    %v506 = vld [vmem:[#allocation8 + $0x40] sm:$0xff]
    %v507 = vld [vmem:[#allocation8 + $0x48] sm:$0xff]
    %v508 = vld [vmem:[#allocation8 + $0x50] sm:$0xff]
    %v509 = vld [vmem:[#allocation8 + $0x58] sm:$0xff]
    %v510 = vld [vmem:[#allocation8 + $0x60] sm:$0xff]
    %v511 = vld [vmem:[#allocation8 + $0x68] sm:$0xff]
    %v512 = vld [vmem:[#allocation8 + $0x70] sm:$0xff]
    %v513 = vld [vmem:[#allocation8 + $0x78] sm:$0xff]
    %v514 = vld [vmem:[#allocation8 + $0x80] sm:$0xff]
    %v515 = vld [vmem:[#allocation8 + $0x88] sm:$0xff]
    %v516 = vld [vmem:[#allocation8 + $0x90] sm:$0xff]
    %v517 = vld [vmem:[#allocation8 + $0x98] sm:$0xff]
    %v518 = vld [vmem:[#allocation8 + $0xa0] sm:$0xff]
    %v519 = vld [vmem:[#allocation8 + $0xa8] sm:$0xff]
    %v520 = vld [vmem:[#allocation8 + $0xb0] sm:$0xff]
    %v521 = vld [vmem:[#allocation8 + $0xb8] sm:$0xff]
    %v522 = vld [vmem:[#allocation8 + $0xc0] sm:$0xff]
    %v523 = vld [vmem:[#allocation8 + $0xc8] sm:$0xff]
    %v524 = vld [vmem:[#allocation8 + $0xd0] sm:$0xff]
    %v525 = vld [vmem:[#allocation8 + $0xd8] sm:$0xff]
    %v526 = vld [vmem:[#allocation10] ss:$2 sm:$0x3]
    %v528 = vlaneseq
    %v529 = vshrl.u32 %v528, 7
    %v530 = vsub.s32 0, %v529
    %v531 = vrot.slane %v526, %v530
    %v532 = vlaneseq
    %v533 = vshrl.u32 %v532, 7
    %v534 = vsub.s32 1, %v533
    %v535 = vrot.slane %v526, %v534
    %v566 = vunpack.c.l.b16 %v498
    %v567 = vunpack.c.h.b16 %v498
    %v568 = vunpack.c.l.b16 %v499
    %v569 = vunpack.c.h.b16 %v499
    %v570 = vunpack.c.l.b16 %v500
    %v571 = vunpack.c.h.b16 %v500
    %v572 = vunpack.c.l.b16 %v501
    %v573 = vunpack.c.h.b16 %v501
    %v574 = vunpack.c.l.b16 %v502
    %v575 = vunpack.c.h.b16 %v502
    %v576 = vunpack.c.l.b16 %v503
    %v577 = vunpack.c.h.b16 %v503
    %v578 = vunpack.c.l.b16 %v504
    %v579 = vunpack.c.h.b16 %v504
    %v580 = vunpack.c.l.b16 %v505
    %v581 = vunpack.c.h.b16 %v505
    %v582 = vunpack.c.l.b16 %v506
    %v583 = vunpack.c.h.b16 %v506
    %v584 = vunpack.c.l.b16 %v507
    %v585 = vunpack.c.h.b16 %v507
    %v586 = vunpack.c.l.b16 %v508
    %v587 = vunpack.c.h.b16 %v508
    %v588 = vunpack.c.l.b16 %v509
    %v589 = vunpack.c.h.b16 %v509
    %v590 = vunpack.c.l.b16 %v510
    %v591 = vunpack.c.h.b16 %v510
    %v592 = vunpack.c.l.b16 %v511
    %v593 = vunpack.c.h.b16 %v511
    %v594 = vunpack.c.l.b16 %v512
    %v595 = vunpack.c.h.b16 %v512
    %v596 = vunpack.c.l.b16 %v513
    %v597 = vunpack.c.h.b16 %v513
    %v598 = vunpack.c.l.b16 %v514
    %v599 = vunpack.c.h.b16 %v514
    %v600 = vunpack.c.l.b16 %v515
    %v601 = vunpack.c.h.b16 %v515
    %v602 = vunpack.c.l.b16 %v516
    %v603 = vunpack.c.h.b16 %v516
    %v604 = vunpack.c.l.b16 %v517
    %v605 = vunpack.c.h.b16 %v517
    %v606 = vunpack.c.l.b16 %v518
    %v607 = vunpack.c.h.b16 %v518
    %v608 = vunpack.c.l.b16 %v519
    %v609 = vunpack.c.h.b16 %v519
    %v610 = vunpack.c.l.b16 %v520
    %v611 = vunpack.c.h.b16 %v520
    %v612 = vunpack.c.l.b16 %v521
    %v613 = vunpack.c.h.b16 %v521
    %v614 = vunpack.c.l.b16 %v522
    %v615 = vunpack.c.h.b16 %v522
    %v616 = vunpack.c.l.b16 %v523
    %v617 = vunpack.c.h.b16 %v523
    %v618 = vunpack.c.l.b16 %v524
    %v619 = vunpack.c.h.b16 %v524
    %v620 = vunpack.c.l.b16 %v525
    %v621 = vunpack.c.h.b16 %v525
    %v622 = vpack.c.b16 %v568, %v566
    %v623 = vpack.c.b16 %v569, %v567
    %v624 = vpack.c.b16 %v572, %v570
    %v625 = vpack.c.b16 %v573, %v571
    %v626 = vpack.c.b16 %v576, %v574
    %v627 = vpack.c.b16 %v577, %v575
    %v628 = vpack.c.b16 %v580, %v578
    %v629 = vpack.c.b16 %v581, %v579
    %v630 = vpack.c.b16 %v584, %v582
    %v631 = vpack.c.b16 %v585, %v583
    %v632 = vpack.c.b16 %v588, %v586
    %v633 = vpack.c.b16 %v589, %v587
    %v634 = vpack.c.b16 %v592, %v590
    %v635 = vpack.c.b16 %v593, %v591
    %v636 = vpack.c.b16 %v596, %v594
    %v637 = vpack.c.b16 %v597, %v595
    %v638 = vpack.c.b16 %v600, %v598
    %v639 = vpack.c.b16 %v601, %v599
    %v640 = vpack.c.b16 %v604, %v602
    %v641 = vpack.c.b16 %v605, %v603
    %v642 = vpack.c.b16 %v608, %v606
    %v643 = vpack.c.b16 %v609, %v607
    %v644 = vpack.c.b16 %v612, %v610
    %v645 = vpack.c.b16 %v613, %v611
    %v646 = vpack.c.b16 %v616, %v614
    %v647 = vpack.c.b16 %v617, %v615
    %v648 = vpack.c.b16 %v620, %v618
    %v649 = vpack.c.b16 %v621, %v619
    %v679 = vsel %vm386, %v497, 0
    %681 = vmatprep.subr.bf16.mxu0 %v623
    %682 = vmatpush1.bf16.msra.mxu0 %v622
    %683 = vmatprep.subr.bf16.mxu0 %v625
    %684 = vmatpush1.bf16.msra.mxu0 %v624
    %685 = vmatprep.subr.bf16.mxu0 %v627
    %686 = vmatpush1.bf16.msra.mxu0 %v626
    %687 = vmatprep.subr.bf16.mxu0 %v629
    %688 = vmatpush1.bf16.msra.mxu0 %v628
    %689 = vmatprep.subr.bf16.mxu0 %v631
    %690 = vmatpush1.bf16.msra.mxu0 %v630
    %691 = vmatprep.subr.bf16.mxu0 %v633
    %692 = vmatpush1.bf16.msra.mxu0 %v632
    %693 = vmatprep.subr.bf16.mxu0 %v635
    %694 = vmatpush1.bf16.msra.mxu0 %v634
    %695 = vmatprep.subr.bf16.mxu0 %v637
    %696 = vmatpush1.bf16.msra.mxu0 %v636
    %697 = vmatprep.subr.bf16.mxu0 %v639
    %698 = vmatpush1.bf16.msra.mxu0 %v638
    %699 = vmatprep.subr.bf16.mxu0 %v641
    %700 = vmatpush1.bf16.msra.mxu0 %v640
    %701 = vmatprep.subr.bf16.mxu0 %v643
    %702 = vmatpush1.bf16.msra.mxu0 %v642
    %703 = vmatprep.subr.bf16.mxu0 %v645
    %704 = vmatpush1.bf16.msra.mxu0 %v644
    %705 = vmatprep.subr.bf16.mxu0 %v647
    %706 = vmatpush1.bf16.msra.mxu0 %v646
    %707 = vmatprep.subr.bf16.mxu0 %v649
    %708 = vmatpush1.bf16.msra.mxu0 %v648
    %709 = vmatprep.subr.bf16.mxu0 0
    %710 = vmatpush1.bf16.msra.mxu0 0
    %711 = vmatprep.subr.bf16.mxu0 0
    %712 = vmatpush1.bf16.msra.mxu0 0
    %713 = vmatprep.mubr.bf16.mxu0 %v679
    %714 = vmatmul.mubr.bf16.gmra.mrb[0].mxu0 %v496
    %v715 = vpop.f32.mrb[0].mxu0
    %v716 = vadd.f32 %v531, %v715
    %v717 = vpop.f32.mrb[0].mxu0
    %v718 = vadd.f32 %v535, %v717
    %v719 = vpop.f32.mrb[0].mxu0
    %v720 = vpop.f32.mrb[0].mxu0
    %721 = vdwg.mxu0
    %v722 = vmul.f32 %v716, 0.5
    %v723 = vmul.f32 %v718, 0.5
    %v724 = vmul.f32 %v716, 0.044715
    %v725 = vmul.f32 %v718, 0.044715
    %v726 = vmul.f32 %v724, %v716
    %v727 = vmul.f32 %v725, %v718
    %v728 = vmul.f32 %v726, %v716
    %v729 = vmul.f32 %v727, %v718
    %v730 = vadd.f32 %v716, %v728
    %v731 = vadd.f32 %v718, %v729
    %v732 = vmul.f32 %v730, 0.7978846
    %v733 = vmul.f32 %v731, 0.7978846
    %v734 = vtanh.pop %v732
    %v735 = vtanh.pop %v733
    %v736 = vadd.f32 %v734, 1.0
    %v737 = vadd.f32 %v735, 1.0
    %v738 = vmul.f32 %v722, %v736
    %v739 = vmul.f32 %v723, %v737
    %s740 = scalar_lea.vmem [#allocation10], 1
    %v741 = vld [vmem:[%s740] ss:$2 sm:$0x3]
    %v743 = vlaneseq
    %v744 = vshrl.u32 %v743, 7
    %v745 = vsub.s32 0, %v744
    %v746 = vrot.slane %v741, %v745
    %v747 = vlaneseq
    %v748 = vshrl.u32 %v747, 7
    %v749 = vsub.s32 1, %v748
    %v750 = vrot.slane %v741, %v749
    %v753 = vmul.f32 %v738, %v746
    %v754 = vmul.f32 %v739, %v750
    %v755 = vadd.f32 %v494, %v753
    %v756 = vadd.f32 %v495, %v754
    %v757 = vpack.c.bf16 %v755, %v755
    %v758 = vpack.c.bf16 %v756, %v756
    %v759 = vld [vmem:[#allocation11] sm:$0xf]
    %v760 = vld [vmem:[#allocation11 + $0x4] sm:$0xf]
    %v761 = vld [vmem:[#allocation11 + $0x8] sm:$0xf]
    %v762 = vld [vmem:[#allocation11 + $0xc] sm:$0xf]
    %v763 = vld [vmem:[#allocation11 + $0x10] sm:$0xf]
    %v764 = vld [vmem:[#allocation11 + $0x14] sm:$0xf]
    %v765 = vld [vmem:[#allocation11 + $0x18] sm:$0xf]
    %v766 = vld [vmem:[#allocation11 + $0x1c] sm:$0xf]
    %v767 = vld [vmem:[#allocation11 + $0x20] sm:$0xf]
    %v768 = vld [vmem:[#allocation11 + $0x24] sm:$0xf]
    %v769 = vld [vmem:[#allocation11 + $0x28] sm:$0xf]
    %v770 = vld [vmem:[#allocation11 + $0x2c] sm:$0xf]
    %v771 = vld [vmem:[#allocation11 + $0x30] sm:$0xf]
    %v772 = vld [vmem:[#allocation11 + $0x34] sm:$0xf]
    %v773 = vld [vmem:[#allocation11 + $0x38] sm:$0xf]
    %v774 = vld [vmem:[#allocation11 + $0x3c] sm:$0xf]
    %v775 = vld [vmem:[#allocation11 + $0x40] sm:$0xf]
    %v776 = vld [vmem:[#allocation11 + $0x44] sm:$0xf]
    %v777 = vld [vmem:[#allocation11 + $0x48] sm:$0xf]
    %v778 = vld [vmem:[#allocation11 + $0x4c] sm:$0xf]
    %v779 = vld [vmem:[#allocation11 + $0x50] sm:$0xf]
    %v780 = vld [vmem:[#allocation11 + $0x54] sm:$0xf]
    %v781 = vld [vmem:[#allocation11 + $0x58] sm:$0xf]
    %v782 = vld [vmem:[#allocation11 + $0x5c] sm:$0xf]
    %v783 = vld [vmem:[#allocation11 + $0x60] sm:$0xf]
    %v784 = vld [vmem:[#allocation11 + $0x64] sm:$0xf]
    %v785 = vld [vmem:[#allocation11 + $0x68] sm:$0xf]
    %v786 = vld [vmem:[#allocation11 + $0x6c] sm:$0xf]
    %v787 = vld [vmem:[#allocation13] sm:$0x1]
    %v789 = vlaneseq
    %v790 = vshrl.u32 %v789, 7
    %v791 = vsub.s32 0, %v790
    %v792 = vrot.slane %v787, %v791
    %v822 = vunpack.c.l.b16 %v759
    %v823 = vunpack.c.l.b16 %v760
    %v824 = vunpack.c.l.b16 %v761
    %v825 = vunpack.c.l.b16 %v762
    %v826 = vunpack.c.l.b16 %v763
    %v827 = vunpack.c.l.b16 %v764
    %v828 = vunpack.c.l.b16 %v765
    %v829 = vunpack.c.l.b16 %v766
    %v830 = vunpack.c.l.b16 %v767
    %v831 = vunpack.c.l.b16 %v768
    %v832 = vunpack.c.l.b16 %v769
    %v833 = vunpack.c.l.b16 %v770
    %v834 = vunpack.c.l.b16 %v771
    %v835 = vunpack.c.l.b16 %v772
    %v836 = vunpack.c.l.b16 %v773
    %v837 = vunpack.c.l.b16 %v774
    %v838 = vunpack.c.l.b16 %v775
    %v839 = vunpack.c.l.b16 %v776
    %v840 = vunpack.c.l.b16 %v777
    %v841 = vunpack.c.l.b16 %v778
    %v842 = vunpack.c.l.b16 %v779
    %v843 = vunpack.c.l.b16 %v780
    %v844 = vunpack.c.l.b16 %v781
    %v845 = vunpack.c.l.b16 %v782
    %v846 = vunpack.c.l.b16 %v783
    %v847 = vunpack.c.l.b16 %v784
    %v848 = vunpack.c.l.b16 %v785
    %v849 = vunpack.c.l.b16 %v786
    %v850 = vpack.c.b16 %v823, %v822
    %v851 = vpack.c.b16 %v825, %v824
    %v852 = vpack.c.b16 %v827, %v826
    %v853 = vpack.c.b16 %v829, %v828
    %v854 = vpack.c.b16 %v831, %v830
    %v855 = vpack.c.b16 %v833, %v832
    %v856 = vpack.c.b16 %v835, %v834
    %v857 = vpack.c.b16 %v837, %v836
    %v858 = vpack.c.b16 %v839, %v838
    %v859 = vpack.c.b16 %v841, %v840
    %v860 = vpack.c.b16 %v843, %v842
    %v861 = vpack.c.b16 %v845, %v844
    %v862 = vpack.c.b16 %v847, %v846
    %v863 = vpack.c.b16 %v849, %v848
    %v879 = vsel %vm386, %v758, 0
    %881 = vmatprep.subr.bf16.mxu0 0
    %882 = vmatpush1.bf16.msra.mxu0 %v850
    %883 = vmatprep.subr.bf16.mxu0 0
    %884 = vmatpush1.bf16.msra.mxu0 %v851
    %885 = vmatprep.subr.bf16.mxu0 0
    %886 = vmatpush1.bf16.msra.mxu0 %v852
    %887 = vmatprep.subr.bf16.mxu0 0
    %888 = vmatpush1.bf16.msra.mxu0 %v853
    %889 = vmatprep.subr.bf16.mxu0 0
    %890 = vmatpush1.bf16.msra.mxu0 %v854
    %891 = vmatprep.subr.bf16.mxu0 0
    %892 = vmatpush1.bf16.msra.mxu0 %v855
    %893 = vmatprep.subr.bf16.mxu0 0
    %894 = vmatpush1.bf16.msra.mxu0 %v856
    %895 = vmatprep.subr.bf16.mxu0 0
    %896 = vmatpush1.bf16.msra.mxu0 %v857
    %897 = vmatprep.subr.bf16.mxu0 0
    %898 = vmatpush1.bf16.msra.mxu0 %v858
    %899 = vmatprep.subr.bf16.mxu0 0
    %900 = vmatpush1.bf16.msra.mxu0 %v859
    %901 = vmatprep.subr.bf16.mxu0 0
    %902 = vmatpush1.bf16.msra.mxu0 %v860
    %903 = vmatprep.subr.bf16.mxu0 0
    %904 = vmatpush1.bf16.msra.mxu0 %v861
    %905 = vmatprep.subr.bf16.mxu0 0
    %906 = vmatpush1.bf16.msra.mxu0 %v862
    %907 = vmatprep.subr.bf16.mxu0 0
    %908 = vmatpush1.bf16.msra.mxu0 %v863
    %909 = vmatprep.subr.bf16.mxu0 0
    %910 = vmatpush1.bf16.msra.mxu0 0
    %911 = vmatprep.subr.bf16.mxu0 0
    %912 = vmatpush1.bf16.msra.mxu0 0
    %913 = vmatprep.mubr.bf16.mxu0 %v879
    %914 = vmatmul.mubr.bf16.gmra.mrb[0].mxu0 %v757
    %v915 = vpop.f32.mrb[0].mxu0
    %v916 = vadd.f32 %v792, %v915
    %v917 = vpop.f32.mrb[0].mxu0
    %v918 = vpop.f32.mrb[0].mxu0
    %v919 = vpop.f32.mrb[0].mxu0
    %920 = vdwg.mxu0
    %921 = vst [vmem:[#allocation14] sm:$0xff] %v916
    // Predicated region
    $region66: #{convtimenet_forward.1} parent=1 // pred_check
      _
    $region67: #{convtimenet_forward.1} parent=1 // pred_check_branch
      %923 = sbr.rel (0) target = $region69
    $region68: #{convtimenet_forward.1} parent=1 // pred_region
      %s925 = ssub.s32 128, 128
      %926 = vsyncadd [#allocation4], %s925
      %s928 = sshll.u32 [#allocation14], 4
      %s929 = int_to_ptr.vmem [resolvable:$true] %s928
      %931 = dma.vmem_to_hbm [thread:$0]  %s929, 128, %s9, [#allocation4]
    $region69: #{convtimenet_forward.1} parent=1 // pred_fallthru
      _
    // Predicated region
    $region70: #{convtimenet_forward.1} parent=1 // pred_check
      _
    $region71: #{convtimenet_forward.1} parent=1 // pred_check_branch
      %933 = sbr.rel (0) target = $region73
    $region72: #{convtimenet_forward.1} parent=1 // pred_region
      %934 = dma.done [#allocation4], 128
    $region73: #{convtimenet_forward.1} parent=1 // pred_fallthru
      _
    %935 = vsyncpa [#allocation3], 1
    %936 = vsyncpa [#allocation6], 1
    %937 = vsyncpa [#allocation9], 1
    %938 = vsyncpa [#allocation12], 1
    %939 = vsyncpa [#allocation4], 1

</llo_original>
